<compile_context>
chip_gen: v7x
topology: tpu7x:2x2x1
jax: 0.10.0
libtpu: 0.0.40
codegen_flags: <defaults>
</compile_context>

<pallas_src>
import functools

import jax
import jax.numpy as jnp
from jax.experimental import pallas as pl
from jax.experimental.pallas import tpu as pltpu


def _united_loss_kernel(p_ref, tgt_ref, logits_ref,
                        out_bce_ref, out_ce_ref, out_mask_ref,
                        acc_bce, acc_ce, acc_mask,
                        *, n_total, block_rows, blocks_per_shard, ):
    # p_ref:      [TN, 1]  probabilities (original dtype)
    # tgt_ref:    [TN, 2]  int32, col 0 = BCE target / CE mask, col 1 = class
    # logits_ref: [TN, C]  logits (original dtype)
    s = pl.program_id(0)          # shard axis ('parallel' -> megacore on v7x)
    j = pl.program_id(1)          # row-block axis ('arbitrary' reduction)

    @pl.when(j == 0)
    def _init():
        acc_bce[...] = jnp.zeros_like(acc_bce)
        acc_ce[...] = jnp.zeros_like(acc_ce)
        acc_mask[...] = jnp.zeros_like(acc_mask)

    # Row-validity mask: rows past n_total (padded tail of the last tile) are
    # excluded from every sum.
    row0 = (s * blocks_per_shard + j) * block_rows
    row = jax.lax.broadcasted_iota(jnp.int32, (block_rows, 1), 0) + row0
    valid = row < n_total                                   # (TN, 1) bool
    valid_f = valid.astype(jnp.float32)

    tgt = tgt_ref[...]
    t0 = jnp.where(valid, tgt[:, 0:1], 0).astype(jnp.float32)   # (TN, 1)
    t1 = jnp.where(valid, tgt[:, 1:2], 0)                       # (TN, 1) int32

    # ---- loss1 partial: BCE numerator (sum over valid rows) ----
    # Cast on the loaded tile; math in f32 on all generations.
    p = jnp.where(valid, p_ref[...].astype(jnp.float32), 0.5)
    log_p = jnp.maximum(jnp.log(p), -100.0)        # PyTorch BCELoss clamp
    log_1mp = jnp.maximum(jnp.log(1.0 - p), -100.0)
    bce = -(t0 * log_p + (1.0 - t0) * log_1mp) * valid_f
    acc_bce[...] += jnp.sum(bce, axis=0, keepdims=True)

    # ---- loss2 partial: masked CE numerator and mask count ----
    # NOTE: for small C the (TN, C) tile pads lanes to 128; acceptable here
    # since the kernel is HBM-bandwidth bound and VMEM use is tile-bounded.
    logits = jnp.where(valid, logits_ref[...].astype(jnp.float32), 0.0)
    m = jnp.max(logits, axis=-1, keepdims=True)                      # (TN, 1)
    lse = m + jnp.log(jnp.sum(jnp.exp(logits - m), axis=-1, keepdims=True))
    col = jax.lax.broadcasted_iota(jnp.int32, logits.shape, 1)       # (TN, C)
    picked = jnp.sum(logits * (col == t1).astype(jnp.float32),
                     axis=-1, keepdims=True)                         # (TN, 1)
    ce = lse - picked                                                # (TN, 1)
    mask = (t0 > 0.0).astype(jnp.float32)          # already 0 on padded rows
    acc_ce[...] += jnp.sum(ce * mask, axis=0, keepdims=True)
    acc_mask[...] += jnp.sum(mask, axis=0, keepdims=True)

    # ---- emit this shard's partials once, on its last row block ----
    @pl.when(j == pl.num_programs(1) - 1)
    def _finalize():
        out_bce_ref[0] = acc_bce[...]
        out_ce_ref[0] = acc_ce[...]
        out_mask_ref[0] = acc_mask[...]


def _round_up(x, m):
    return ((x + m - 1) // m) * m


def _choose_block_rows(n, c, itemsize):
    # Biggest row tile (multiple of 8, <= 1024) such that the double-buffered,
    # lane-padded logits tile stays well under the scoped-VMEM budget on all
    # of v5e / v6e / v7x (v7x: 64 MiB physical, 32 MiB scoped).
    lanes = _round_up(max(c, 1), 128)
    budget = 4 * 1024 * 1024            # bytes for the 2x-buffered logits tile
    rows = max(8, min(1024, budget // (2 * lanes * itemsize)))
    rows -= rows % 8
    return min(rows, _round_up(n, 8))


def united_weighted_loss_sum_others(inputs, target, alpha=0.5, beta=1.01,
                                    offset=0, block_rows=None):
    """Normal-mode forward of UnitedWeightedLossSumOthers.

    inputs = (input0 [N] probs, input1 [N, C] logits, input_final [N, C]);
    target = [N, 2] int (target[:,0] = BCE target / CE row mask,
                         target[:,1] = CE class index).
    """
    input0, input1 = inputs[0], inputs[1]
    n = input0.shape[0]
    c = input1.shape[1]

    # Keep original dtypes in HBM; the kernel casts each loaded tile.
    p = input0.reshape(n, 1)
    tgt = target.astype(jnp.int32)
    logits = input1

    if block_rows is None:
        block_rows = _choose_block_rows(n, c, logits.dtype.itemsize)
    block_rows = _round_up(max(int(block_rows), 8), 8)
    num_blocks = pl.cdiv(n, block_rows)
    # Use a 'parallel' shard axis (v7x megacore) only when the blocks split
    # evenly, so no shard ever addresses a fully out-of-range block.
    num_shards = 2 if (num_blocks >= 2 and num_blocks % 2 == 0) else 1
    blocks_per_shard = num_blocks // num_shards

    kernel = functools.partial(
        _united_loss_kernel, n_total=n, block_rows=block_rows,
        blocks_per_shard=blocks_per_shard)

    row_map = lambda s, j: (s * blocks_per_shard + j, 0)
    part_shape = jax.ShapeDtypeStruct((num_shards, 1, 1), jnp.float32)
    part_spec = pl.BlockSpec((1, 1, 1), lambda s, j: (s, 0, 0))

    bytes_accessed = (n * c * logits.dtype.itemsize
                      + n * p.dtype.itemsize
                      + n * 2 * 4
                      + num_shards * 3 * 4)
    cost = pl.CostEstimate(flops=n * (4 * c + 16),
                           transcendentals=n * (c + 3),
                           bytes_accessed=bytes_accessed)

    out_bce, out_ce, out_mask = pl.pallas_call(
        kernel,
        out_shape=(part_shape, part_shape, part_shape),
        grid=(num_shards, blocks_per_shard),
        in_specs=[
            pl.BlockSpec((block_rows, 1), row_map),   # probabilities
            pl.BlockSpec((block_rows, 2), row_map),   # target (int32, 2 cols)
            pl.BlockSpec((block_rows, c), row_map),   # logits
        ],
        out_specs=(part_spec, part_spec, part_spec),
        scratch_shapes=[pltpu.VMEM((1, 1), jnp.float32)] * 3,
        compiler_params=pltpu.CompilerParams(
            dimension_semantics=(pltpu.PARALLEL, pltpu.ARBITRARY)),
        cost_estimate=cost,
    )(p, tgt, logits)

    # Tiny epilogue in the wrapper: global means + alpha-combine.
    loss1 = jnp.sum(out_bce) / n
    loss2 = jnp.sum(out_ce) / jnp.sum(out_mask)   # NaN if no masked row (same as PyTorch)
    return loss1 + alpha * loss2


def _reference(inputs, target, alpha):
    """Pure-JAX reference, same semantics as the PyTorch forward (normal mode)."""
    input0, input1 = inputs[0], inputs[1]
    p = input0.astype(jnp.float32)
    t0f = target[:, 0].astype(jnp.float32)
    bce = -(t0f * jnp.maximum(jnp.log(p), -100.0)
            + (1.0 - t0f) * jnp.maximum(jnp.log(1.0 - p), -100.0))
    loss1 = bce.mean()
    mask = t0f > 0
    logits = input1.astype(jnp.float32)
    lse = jax.scipy.special.logsumexp(logits, axis=-1)
    picked = jnp.take_along_axis(logits, target[:, 1:2], axis=1)[:, 0]
    ce = lse - picked
    loss2 = jnp.sum(jnp.where(mask, ce, 0.0)) / jnp.sum(mask)
    return loss1 + alpha * loss2


if __name__ == "__main__":
    alpha = 0.5
    # (N, C, block_rows): single tile; 3 tiles with a partial tail (1 shard);
    # 4 tiles split across the 'parallel' shard axis.
    cases = [(16, 8, None), (272, 8, 128), (512, 16, 128)]
    for n, c, br in cases:
        key = jax.random.PRNGKey(0)
        k1, k2, k3, k4, k5 = jax.random.split(key, 5)
        input0 = jax.nn.sigmoid(jax.random.normal(k1, (n,), dtype=jnp.float32))
        input1 = jax.random.normal(k2, (n, c), dtype=jnp.float32)
        input_final = jax.random.normal(k3, (n, c), dtype=jnp.float32)  # 'united' mode only
        target0 = (jax.random.uniform(k4, (n,)) > 0.5).astype(jnp.int32)
        target0 = target0.at[0].set(1)   # ensure at least one masked row
        target1 = jax.random.randint(k5, (n,), 0, c, dtype=jnp.int32)
        target = jnp.stack([target0, target1], axis=1)

        loss = united_weighted_loss_sum_others(
            (input0, input1, input_final), target, alpha=alpha, block_rows=br)
        loss = jax.block_until_ready(loss)
        ref = _reference((input0, input1, input_final), target, alpha)
        assert jnp.allclose(loss, ref, atol=1e-5, rtol=1e-5), (n, c, br, loss, ref)

    print("KERNEL_OK")
</pallas_src>

<mosaic_0001>
module attributes {stable_mosaic.version = 11 : i64} {
  func.func @_united_loss_kernel(%arg0: i32, %arg1: i32, %arg2: memref<16x1xf32, #tpu.memory_space<vmem>>, %arg3: memref<16x2xi32, #tpu.memory_space<vmem>>, %arg4: memref<16x8xf32, #tpu.memory_space<vmem>>, %arg5: memref<1x1x1xf32, #tpu.memory_space<vmem>>, %arg6: memref<1x1x1xf32, #tpu.memory_space<vmem>>, %arg7: memref<1x1x1xf32, #tpu.memory_space<vmem>>, %arg8: memref<1x1xf32, #tpu.memory_space<vmem>>, %arg9: memref<1x1xf32, #tpu.memory_space<vmem>>, %arg10: memref<1x1xf32, #tpu.memory_space<vmem>>) attributes {dimension_semantics = [#tpu.dimension_semantics<parallel>, #tpu.dimension_semantics<arbitrary>], iteration_bounds = array<i64: 1, 1>, scalar_prefetch = 0 : i64, scratch_operands = 3 : i64, tpu.core_type = #tpu.core_type<tc>, window_params = [{transform_indices = @transform_0, window_bounds = array<i64: 16, 1>}, {transform_indices = @transform_1, window_bounds = array<i64: 16, 2>}, {transform_indices = @transform_2, window_bounds = array<i64: 16, 8>}, {transform_indices = @transform_3, window_bounds = array<i64: 1, 1, 1>}, {transform_indices = @transform_4, window_bounds = array<i64: 1, 1, 1>}, {transform_indices = @transform_5, window_bounds = array<i64: 1, 1, 1>}]} {
    %c0_i32 = arith.constant 0 : i32
    %0 = arith.cmpi eq, %arg1, %c0_i32 : i32
    %1 = arith.extui %0 : i1 to i32
    %c0_i32_0 = arith.constant 0 : i32
    %2 = arith.cmpi ne, %1, %c0_i32_0 : i32
    scf.if %2 {
      %cst_36 = arith.constant 0.000000e+00 : f32
      %86 = vector.broadcast %cst_36 : f32 to vector<1x1xf32>
      %c0_37 = arith.constant 0 : index
      %c0_38 = arith.constant 0 : index
      %87 = vector.load %arg8[%c0_37, %c0_38] : memref<1x1xf32, #tpu.memory_space<vmem>>, vector<1x1xf32>
      tpu.vector_store %arg8[%c0_37, %c0_38], %86 {strides = array<i32>} : memref<1x1xf32, #tpu.memory_space<vmem>>, vector<1x1xf32>,
      %cst_39 = arith.constant 0.000000e+00 : f32
      %88 = vector.broadcast %cst_39 : f32 to vector<1x1xf32>
      %c0_40 = arith.constant 0 : index
      %c0_41 = arith.constant 0 : index
      %89 = vector.load %arg9[%c0_40, %c0_41] : memref<1x1xf32, #tpu.memory_space<vmem>>, vector<1x1xf32>
      tpu.vector_store %arg9[%c0_40, %c0_41], %88 {strides = array<i32>} : memref<1x1xf32, #tpu.memory_space<vmem>>, vector<1x1xf32>,
      %cst_42 = arith.constant 0.000000e+00 : f32
      %90 = vector.broadcast %cst_42 : f32 to vector<1x1xf32>
      %c0_43 = arith.constant 0 : index
      %c0_44 = arith.constant 0 : index
      %91 = vector.load %arg10[%c0_43, %c0_44] : memref<1x1xf32, #tpu.memory_space<vmem>>, vector<1x1xf32>
      tpu.vector_store %arg10[%c0_43, %c0_44], %90 {strides = array<i32>} : memref<1x1xf32, #tpu.memory_space<vmem>>, vector<1x1xf32>,
    } else {
    }
    %c1_i32 = arith.constant 1 : i32
    %3 = arith.muli %arg0, %c1_i32 : i32
    %4 = arith.addi %3, %arg1 : i32
    %c16_i32 = arith.constant 16 : i32
    %5 = arith.muli %4, %c16_i32 : i32
    %6 = tpu.iota {dimensions = array<i32: 0>} : vector<16x1xi32>
    %7 = vector.broadcast %5 : i32 to vector<16x1xi32>
    %8 = arith.addi %6, %7 : vector<16x1xi32>
    %c16_i32_1 = arith.constant 16 : i32
    %9 = vector.broadcast %c16_i32_1 : i32 to vector<16x1xi32>
    %10 = arith.cmpi slt, %8, %9 : vector<16x1xi32>
    %11 = arith.extui %10 : vector<16x1xi1> to vector<16x1xi32>
    %12 = arith.sitofp %11 : vector<16x1xi32> to vector<16x1xf32>
    %c0 = arith.constant 0 : index
    %c0_2 = arith.constant 0 : index
    %13 = vector.load %arg3[%c0, %c0_2] : memref<16x2xi32, #tpu.memory_space<vmem>>, vector<16x2xi32>
    %14 = vector.extract_strided_slice %13 {offsets = [0, 0], sizes = [16, 1], strides = [1, 1]} : vector<16x2xi32> to vector<16x1xi32>
    %c0_i32_3 = arith.constant 0 : i32
    %15 = vector.broadcast %c0_i32_3 : i32 to vector<16x1xi32>
    %16 = arith.select %10, %14, %15 : vector<16x1xi1>, vector<16x1xi32>
    %17 = arith.sitofp %16 : vector<16x1xi32> to vector<16x1xf32>
    %18 = vector.extract_strided_slice %13 {offsets = [0, 1], sizes = [16, 1], strides = [1, 1]} : vector<16x2xi32> to vector<16x1xi32>
    %c0_i32_4 = arith.constant 0 : i32
    %19 = vector.broadcast %c0_i32_4 : i32 to vector<16x1xi32>
    %20 = arith.select %10, %18, %19 : vector<16x1xi1>, vector<16x1xi32>
    %c0_5 = arith.constant 0 : index
    %c0_6 = arith.constant 0 : index
    %21 = vector.load %arg2[%c0_5, %c0_6] : memref<16x1xf32, #tpu.memory_space<vmem>>, vector<16x1xf32>
    %cst = arith.constant 5.000000e-01 : f32
    %22 = vector.broadcast %cst : f32 to vector<16x1xf32>
    %23 = arith.select %10, %21, %22 : vector<16x1xi1>, vector<16x1xf32>
    %24 = math.log %23 : vector<16x1xf32>
    %cst_7 = arith.constant -1.000000e+02 : f32
    %25 = vector.broadcast %cst_7 : f32 to vector<16x1xf32>
    %26 = arith.maximumf %24, %25 : vector<16x1xf32>
    %cst_8 = arith.constant 1.000000e+00 : f32
    %27 = vector.broadcast %cst_8 : f32 to vector<16x1xf32>
    %28 = arith.subf %27, %23 : vector<16x1xf32>
    %29 = math.log %28 : vector<16x1xf32>
    %cst_9 = arith.constant -1.000000e+02 : f32
    %30 = vector.broadcast %cst_9 : f32 to vector<16x1xf32>
    %31 = arith.maximumf %29, %30 : vector<16x1xf32>
    %32 = arith.mulf %17, %26 : vector<16x1xf32>
    %cst_10 = arith.constant 1.000000e+00 : f32
    %33 = vector.broadcast %cst_10 : f32 to vector<16x1xf32>
    %34 = arith.subf %33, %17 : vector<16x1xf32>
    %35 = arith.mulf %34, %31 : vector<16x1xf32>
    %36 = arith.addf %32, %35 : vector<16x1xf32>
    %cst_11 = arith.constant 0.000000e+00 : f32
    %37 = vector.broadcast %cst_11 : f32 to vector<16x1xf32>
    %38 = arith.subf %37, %36 : vector<16x1xf32>
    %39 = arith.mulf %38, %12 : vector<16x1xf32>
    %c0_12 = arith.constant 0 : index
    %c0_13 = arith.constant 0 : index
    %40 = vector.load %arg8[%c0_12, %c0_13] : memref<1x1xf32, #tpu.memory_space<vmem>>, vector<1x1xf32>
    %cst_14 = arith.constant dense<0.000000e+00> : vector<1xf32>
    %41 = vector.multi_reduction <add>, %39, %cst_14 [0] : vector<16x1xf32> to vector<1xf32>
    %42 = vector.shape_cast %41 : vector<1xf32> to vector<1x1xf32>
    %43 = arith.addf %40, %42 : vector<1x1xf32>
    %c0_15 = arith.constant 0 : index
    %c0_16 = arith.constant 0 : index
    %44 = vector.load %arg8[%c0_15, %c0_16] : memref<1x1xf32, #tpu.memory_space<vmem>>, vector<1x1xf32>
    tpu.vector_store %arg8[%c0_15, %c0_16], %43 {strides = array<i32>} : memref<1x1xf32, #tpu.memory_space<vmem>>, vector<1x1xf32>,
    %c0_17 = arith.constant 0 : index
    %c0_18 = arith.constant 0 : index
    %45 = vector.load %arg4[%c0_17, %c0_18] : memref<16x8xf32, #tpu.memory_space<vmem>>, vector<16x8xf32>
    %cst_19 = arith.constant 0.000000e+00 : f32
    %46 = vector.shape_cast %10 : vector<16x1xi1> to vector<16x1xi1>
    %47 = vector.broadcast %46 : vector<16x1xi1> to vector<16x8xi1>
    %48 = vector.broadcast %cst_19 : f32 to vector<16x8xf32>
    %49 = arith.select %47, %45, %48 : vector<16x8xi1>, vector<16x8xf32>
    %cst_20 = arith.constant dense<0xFF800000> : vector<16xf32>
    %50 = vector.multi_reduction <maximumf>, %49, %cst_20 [1] : vector<16x8xf32> to vector<16xf32>
    %51 = vector.shape_cast %50 : vector<16xf32> to vector<16x1xf32>
    %52 = vector.broadcast %51 : vector<16x1xf32> to vector<16x8xf32>
    %53 = arith.subf %49, %52 : vector<16x8xf32>
    %54 = math.exp %53 : vector<16x8xf32>
    %cst_21 = arith.constant dense<0.000000e+00> : vector<16xf32>
    %55 = vector.multi_reduction <add>, %54, %cst_21 [1] : vector<16x8xf32> to vector<16xf32>
    %56 = vector.shape_cast %55 : vector<16xf32> to vector<16x1xf32>
    %57 = math.log %56 : vector<16x1xf32>
    %58 = arith.addf %51, %57 : vector<16x1xf32>
    %59 = tpu.iota {dimensions = array<i32: 1>} : vector<16x8xi32>
    %60 = vector.broadcast %20 : vector<16x1xi32> to vector<16x8xi32>
    %61 = arith.cmpi eq, %59, %60 : vector<16x8xi32>
    %62 = arith.extui %61 : vector<16x8xi1> to vector<16x8xi32>
    %63 = arith.sitofp %62 : vector<16x8xi32> to vector<16x8xf32>
    %64 = arith.mulf %49, %63 : vector<16x8xf32>
    %cst_22 = arith.constant dense<0.000000e+00> : vector<16xf32>
    %65 = vector.multi_reduction <add>, %64, %cst_22 [1] : vector<16x8xf32> to vector<16xf32>
    %66 = vector.shape_cast %65 : vector<16xf32> to vector<16x1xf32>
    %67 = arith.subf %58, %66 : vector<16x1xf32>
    %cst_23 = arith.constant 0.000000e+00 : f32
    %68 = vector.broadcast %cst_23 : f32 to vector<16x1xf32>
    %69 = arith.cmpf ogt, %17, %68 : vector<16x1xf32>
    %70 = arith.extui %69 : vector<16x1xi1> to vector<16x1xi32>
    %71 = arith.sitofp %70 : vector<16x1xi32> to vector<16x1xf32>
    %c0_24 = arith.constant 0 : index
    %c0_25 = arith.constant 0 : index
    %72 = vector.load %arg9[%c0_24, %c0_25] : memref<1x1xf32, #tpu.memory_space<vmem>>, vector<1x1xf32>
    %73 = arith.mulf %67, %71 : vector<16x1xf32>
    %cst_26 = arith.constant dense<0.000000e+00> : vector<1xf32>
    %74 = vector.multi_reduction <add>, %73, %cst_26 [0] : vector<16x1xf32> to vector<1xf32>
    %75 = vector.shape_cast %74 : vector<1xf32> to vector<1x1xf32>
    %76 = arith.addf %72, %75 : vector<1x1xf32>
    %c0_27 = arith.constant 0 : index
    %c0_28 = arith.constant 0 : index
    %77 = vector.load %arg9[%c0_27, %c0_28] : memref<1x1xf32, #tpu.memory_space<vmem>>, vector<1x1xf32>
    tpu.vector_store %arg9[%c0_27, %c0_28], %76 {strides = array<i32>} : memref<1x1xf32, #tpu.memory_space<vmem>>, vector<1x1xf32>,
    %c0_29 = arith.constant 0 : index
    %c0_30 = arith.constant 0 : index
    %78 = vector.load %arg10[%c0_29, %c0_30] : memref<1x1xf32, #tpu.memory_space<vmem>>, vector<1x1xf32>
    %cst_31 = arith.constant dense<0.000000e+00> : vector<1xf32>
    %79 = vector.multi_reduction <add>, %71, %cst_31 [0] : vector<16x1xf32> to vector<1xf32>
    %80 = vector.shape_cast %79 : vector<1xf32> to vector<1x1xf32>
    %81 = arith.addf %78, %80 : vector<1x1xf32>
    %c0_32 = arith.constant 0 : index
    %c0_33 = arith.constant 0 : index
    %82 = vector.load %arg10[%c0_32, %c0_33] : memref<1x1xf32, #tpu.memory_space<vmem>>, vector<1x1xf32>
    tpu.vector_store %arg10[%c0_32, %c0_33], %81 {strides = array<i32>} : memref<1x1xf32, #tpu.memory_space<vmem>>, vector<1x1xf32>,
    %c0_i32_34 = arith.constant 0 : i32
    %83 = arith.cmpi eq, %arg1, %c0_i32_34 : i32
    %84 = arith.extui %83 : i1 to i32
    %c0_i32_35 = arith.constant 0 : i32
    %85 = arith.cmpi ne, %84, %c0_i32_35 : i32
    scf.if %85 {
      %c0_36 = arith.constant 0 : index
      %c0_37 = arith.constant 0 : index
      %86 = vector.load %arg8[%c0_36, %c0_37] : memref<1x1xf32, #tpu.memory_space<vmem>>, vector<1x1xf32>
      %c0_38 = arith.constant 0 : index
      %c0_39 = arith.constant 0 : index
      %c0_40 = arith.constant 0 : index
      %87 = vector.load %arg5[%c0_38, %c0_39, %c0_40] : memref<1x1x1xf32, #tpu.memory_space<vmem>>, vector<1x1x1xf32>
      %88 = vector.shape_cast %87 : vector<1x1x1xf32> to vector<1x1xf32>
      %89 = vector.shape_cast %86 : vector<1x1xf32> to vector<1x1x1xf32>
      tpu.vector_store %arg5[%c0_38, %c0_39, %c0_40], %89 {strides = array<i32>} : memref<1x1x1xf32, #tpu.memory_space<vmem>>, vector<1x1x1xf32>,
      %c0_41 = arith.constant 0 : index
      %c0_42 = arith.constant 0 : index
      %90 = vector.load %arg9[%c0_41, %c0_42] : memref<1x1xf32, #tpu.memory_space<vmem>>, vector<1x1xf32>
      %c0_43 = arith.constant 0 : index
      %c0_44 = arith.constant 0 : index
      %c0_45 = arith.constant 0 : index
      %91 = vector.load %arg6[%c0_43, %c0_44, %c0_45] : memref<1x1x1xf32, #tpu.memory_space<vmem>>, vector<1x1x1xf32>
      %92 = vector.shape_cast %91 : vector<1x1x1xf32> to vector<1x1xf32>
      %93 = vector.shape_cast %90 : vector<1x1xf32> to vector<1x1x1xf32>
      tpu.vector_store %arg6[%c0_43, %c0_44, %c0_45], %93 {strides = array<i32>} : memref<1x1x1xf32, #tpu.memory_space<vmem>>, vector<1x1x1xf32>,
      %c0_46 = arith.constant 0 : index
      %c0_47 = arith.constant 0 : index
      %94 = vector.load %arg10[%c0_46, %c0_47] : memref<1x1xf32, #tpu.memory_space<vmem>>, vector<1x1xf32>
      %c0_48 = arith.constant 0 : index
      %c0_49 = arith.constant 0 : index
      %c0_50 = arith.constant 0 : index
      %95 = vector.load %arg7[%c0_48, %c0_49, %c0_50] : memref<1x1x1xf32, #tpu.memory_space<vmem>>, vector<1x1x1xf32>
      %96 = vector.shape_cast %95 : vector<1x1x1xf32> to vector<1x1xf32>
      %97 = vector.shape_cast %94 : vector<1x1xf32> to vector<1x1x1xf32>
      tpu.vector_store %arg7[%c0_48, %c0_49, %c0_50], %97 {strides = array<i32>} : memref<1x1x1xf32, #tpu.memory_space<vmem>>, vector<1x1x1xf32>,
    } else {
    }
    return
  }
  func.func @transform_0(%arg0: i32, %arg1: i32) -> (i32, i32) {
    %c1_i32 = arith.constant 1 : i32
    %0 = arith.muli %arg0, %c1_i32 : i32
    %1 = arith.addi %0, %arg1 : i32
    %c0_i32 = arith.constant 0 : i32
    %c0_i32_0 = arith.constant 0 : i32
    return %1, %c0_i32 : i32, i32
  }
  func.func @transform_1(%arg0: i32, %arg1: i32) -> (i32, i32) {
    %c1_i32 = arith.constant 1 : i32
    %0 = arith.muli %arg0, %c1_i32 : i32
    %1 = arith.addi %0, %arg1 : i32
    %c0_i32 = arith.constant 0 : i32
    %c0_i32_0 = arith.constant 0 : i32
    return %1, %c0_i32 : i32, i32
  }
  func.func @transform_2(%arg0: i32, %arg1: i32) -> (i32, i32) {
    %c1_i32 = arith.constant 1 : i32
    %0 = arith.muli %arg0, %c1_i32 : i32
    %1 = arith.addi %0, %arg1 : i32
    %c0_i32 = arith.constant 0 : i32
    %c0_i32_0 = arith.constant 0 : i32
    return %1, %c0_i32 : i32, i32
  }
  func.func @transform_3(%arg0: i32, %arg1: i32) -> (i32, i32, i32) {
    %c0_i32 = arith.constant 0 : i32
    %c0_i32_0 = arith.constant 0 : i32
    %c0_i32_1 = arith.constant 0 : i32
    return %arg0, %c0_i32, %c0_i32_0 : i32, i32, i32
  }
  func.func @transform_4(%arg0: i32, %arg1: i32) -> (i32, i32, i32) {
    %c0_i32 = arith.constant 0 : i32
    %c0_i32_0 = arith.constant 0 : i32
    %c0_i32_1 = arith.constant 0 : i32
    return %arg0, %c0_i32, %c0_i32_0 : i32, i32, i32
  }
  func.func @transform_5(%arg0: i32, %arg1: i32) -> (i32, i32, i32) {
    %c0_i32 = arith.constant 0 : i32
    %c0_i32_0 = arith.constant 0 : i32
    %c0_i32_1 = arith.constant 0 : i32
    return %arg0, %c0_i32, %c0_i32_0 : i32, i32, i32
  }
}

</mosaic_0001>

<llo_original>
// kernel: tpu_custom_call.1
$region0: #{tpu_custom_call.1}
  #allocation0 [shape = 'u32[]', space=smem, size = 0x4, offset = 0x4, fixed_abs, tag = 'smem constant byte address 0x4 - core index']
  #allocation1 [shape = 'u32[144,128]{1,0:T(1,128)}', space=vmem, size = 0x12000, scoped, tag = 'internal scratch']
  #allocation2 [shape = 'f32[1,1]{1,0:T(1,128)}', space=vmem, size = 0x200, scoped, tag = 'scratch operand']
  #allocation3 [shape = 'f32[1,1]{1,0:T(1,128)}', space=vmem, size = 0x200, scoped, tag = 'scratch operand']
  #allocation4 [shape = 'f32[1,1]{1,0:T(1,128)}', space=vmem, size = 0x200, scoped, tag = 'scratch operand']
  %s0 = inlined_call_operand.vmem [shape: f32[16,1], index: 0, kind: input, shape index: {}]
  %s1 = inlined_call_operand.vmem [shape: s32[16,2], index: 1, kind: input, shape index: {}]
  %s2 = inlined_call_operand.vmem [shape: f32[16,8], index: 2, kind: input, shape index: {}]
  %s3 = inlined_call_operand.hbm [shape: f32[1,1,1], index: 3, kind: output, shape index: {0}]
  %s4 = inlined_call_operand.hbm [shape: f32[1,1,1], index: 4, kind: output, shape index: {1}]
  %s5 = inlined_call_operand.hbm [shape: f32[1,1,1], index: 5, kind: output, shape index: {2}]
  %6 = xla_tuple %s3, %s4, %s5
  %s7 = sld [smem:[#allocation0]]
  $region46: #{tpu_custom_call.1} parent=0
    _
  %s9 = ssub.s32 1, %s7
  %s10 = scalar_select 0, %s9, %s7
  $region1: #{tpu_custom_call.1} parent=0
    #allocation5 [shape = 'u8[512]{0}', space=vmem, size = 0x400, scoped, tag = 'output window, operand 0, single buffered']
    #allocation6 [shape = 's32[1]{0}', space=sflag, size = 0x4, scoped, tag = 'scoped memory for tpu_custom_call.1']
    #allocation7 [shape = 'u8[512]{0}', space=vmem, size = 0x400, scoped, tag = 'output window, operand 1, single buffered']
    #allocation8 [shape = 's32[1]{0}', space=sflag, size = 0x4, scoped, tag = 'scoped memory for tpu_custom_call.1']
    #allocation9 [shape = 'u8[512]{0}', space=vmem, size = 0x400, scoped, tag = 'output window, operand 2, single buffered']
    %11 = vsyncpa [#allocation6], 0
    %12 = vsyncpa [#allocation8], 0
    // Predicated region
    $region2: #{tpu_custom_call.1} parent=1 // pred_check
      _
    $region3: #{tpu_custom_call.1} parent=1 // pred_check_branch
      %14 = sbr.rel (0) target = $region5
    $region4: #{tpu_custom_call.1} parent=1 // pred_region
      %s15 = sadd.s32 0, 0
      %s16 = smul.u32 2, %s15
      %p17 = scmp.lt.s32.totalorder %s16, 1
      %s18 = scalar_select %p17, %s16, 1
      %s19 = smul.addr %s18, 8
      %s20 = scalar_lea.vmem %s0, %s19
      %s21 = sadd.s32 0, 0
      %s22 = smul.u32 2, %s21
    $region5: #{tpu_custom_call.1} parent=1 // pred_fallthru
      _
    // Predicated region
    $region6: #{tpu_custom_call.1} parent=1 // pred_check
      _
    $region7: #{tpu_custom_call.1} parent=1 // pred_check_branch
      %24 = sbr.rel (0) target = $region9
    $region8: #{tpu_custom_call.1} parent=1 // pred_region
      %s25 = sadd.s32 0, 0
      %s26 = smul.u32 2, %s25
      %p27 = scmp.lt.s32.totalorder %s26, 1
      %s28 = scalar_select %p27, %s26, 1
      %s29 = smul.addr %s28, 8
      %s30 = scalar_lea.vmem %s1, %s29
      %s31 = sadd.s32 0, 0
      %s32 = smul.u32 2, %s31
    $region9: #{tpu_custom_call.1} parent=1 // pred_fallthru
      _
    // Predicated region
    $region10: #{tpu_custom_call.1} parent=1 // pred_check
      _
    $region11: #{tpu_custom_call.1} parent=1 // pred_check_branch
      %34 = sbr.rel (0) target = $region13
    $region12: #{tpu_custom_call.1} parent=1 // pred_region
      %s35 = sadd.s32 0, 0
      %s36 = smul.u32 2, %s35
      %p37 = scmp.lt.s32.totalorder %s36, 1
      %s38 = scalar_select %p37, %s36, 1
      %s39 = smul.addr %s38, 8
      %s40 = scalar_lea.vmem %s2, %s39
      %s41 = sadd.s32 0, 0
      %s42 = smul.u32 2, %s41
    $region13: #{tpu_custom_call.1} parent=1 // pred_fallthru
      _
    %s43 = sadd.s32 0, 0
    %s44 = smul.u32 2, %s43
    %p45 = scmp.lt.s32.totalorder %s44, 1
    %s46 = scalar_select %p45, %s44, 1
    %s47 = smul.addr %s46, 8
    %s48 = scalar_lea.vmem %s0, %s47
    %s49 = sadd.s32 0, 0
    %s50 = smul.u32 2, %s49
    %p51 = scmp.lt.s32.totalorder %s50, 1
    %s52 = scalar_select %p51, %s50, 1
    %s53 = smul.addr %s52, 8
    %s54 = scalar_lea.vmem %s1, %s53
    %s55 = sadd.s32 0, 0
    %s56 = smul.u32 2, %s55
    %p57 = scmp.lt.s32.totalorder %s56, 1
    %s58 = scalar_select %p57, %s56, 1
    %s59 = smul.addr %s58, 8
    %s60 = scalar_lea.vmem %s2, %s59
    %s61 = sadd.s32 0, 0
    %s62 = smul.u32 2, %s61
    %p63 = scmp.lt.s32.totalorder %s62, 1
    %s64 = scalar_select %p63, %s62, 1
    %s65 = smul.addr %s64, 8
    %s66 = scalar_lea.vmem %s0, %s65
    %s67 = sadd.s32 0, 0
    %s68 = smul.u32 2, %s67
    %s69 = sadd.s32 0, 0
    %s70 = smul.u32 2, %s69
    %p71 = scmp.lt.s32.totalorder %s70, 1
    %s72 = scalar_select %p71, %s70, 1
    %s73 = smul.addr %s72, 8
    %s74 = scalar_lea.vmem %s1, %s73
    %s75 = sadd.s32 0, 0
    %s76 = smul.u32 2, %s75
    %s77 = sadd.s32 0, 0
    %s78 = smul.u32 2, %s77
    %p79 = scmp.lt.s32.totalorder %s78, 1
    %s80 = scalar_select %p79, %s78, 1
    %s81 = smul.addr %s80, 8
    %s82 = scalar_lea.vmem %s2, %s81
    %s83 = sadd.s32 0, 0
    %s84 = smul.u32 2, %s83
    %p85 = scmp.eq.s32.totalorder 0, 0
    // Predicated region
    $region14: #{tpu_custom_call.1} parent=1 // pred_check
      %p86 = pneg %p85
    $region15: #{tpu_custom_call.1} parent=1 // pred_check_branch
      %88 = sbr.rel (%p86) target = $region17
    $region16: #{tpu_custom_call.1} parent=1 // pred_region
      %vm89 = vcmask 0
      %90 = vst.msk [vmem:[#allocation2] sm:$0x1] %vm89, 0.0
      %91 = vst.msk [vmem:[#allocation3] sm:$0x1] %vm89, 0.0
      %92 = vst.msk [vmem:[#allocation4] sm:$0x1] %vm89, 0.0
    $region17: #{tpu_custom_call.1} parent=1 // pred_fallthru
      _
    %s93 = sadd.s32 0, 0
    %s94 = smul.u32 %s93, 16
    %v95 = vlaneseq
    %v96 = vshrl.u32 %v95, 7
    %v97 = vadd.s32 %v96, 8
    %v98 = vstv %s94
    %v99 = vadd.s32 %v96, %v98
    %v100 = vadd.s32 %v97, %v98
    %vm101 = vcmp.lt.s32.totalorder %v99, 16
    %vm102 = vcmp.lt.s32.totalorder %v100, 16
    %v103 = vsel %vm101, 1, 0
    %v104 = vsel %vm102, 1, 0
    %v105 = vcvt.s32.f32 %v103
    %v106 = vcvt.s32.f32 %v104
    %v107 = vld [vmem:[%s74] sm:$0xff]
    %v108 = vld [vmem:[%s74 + $0x8] sm:$0xff]
    %v109 = vsel %vm101, %v107, 0
    %v110 = vsel %vm102, %v108, 0
    %v111 = vcvt.s32.f32 %v109
    %v112 = vcvt.s32.f32 %v110
    %v113 = vld [vmem:[%s66] sm:$0xff]
    %v114 = vld [vmem:[%s66 + $0x8] sm:$0xff]
    %v115 = vsel %vm101, %v113, 0.5
    %v116 = vsel %vm102, %v114, 0.5
    %v117 = vlog2.pop %v115
    %v118 = vmul.f32 %v117, 0.6931472
    %v119 = vlog2.pop %v116
    %v120 = vmul.f32 %v119, 0.6931472
    %v121 = vmax.f32 %v118, -100.0
    %v122 = vmax.f32 %v120, -100.0
    %v123 = vsub.f32 1.0, %v115
    %v124 = vsub.f32 1.0, %v116
    %v125 = vlog2.pop %v123
    %v126 = vmul.f32 %v125, 0.6931472
    %v127 = vlog2.pop %v124
    %v128 = vmul.f32 %v127, 0.6931472
    %v129 = vmax.f32 %v126, -100.0
    %v130 = vmax.f32 %v128, -100.0
    %v131 = vmul.f32 %v111, %v121
    %v132 = vmul.f32 %v112, %v122
    %v133 = vsub.f32 1.0, %v111
    %v134 = vsub.f32 1.0, %v112
    %v135 = vmul.f32 %v133, %v129
    %v136 = vmul.f32 %v134, %v130
    %v137 = vadd.f32 %v131, %v135
    %v138 = vadd.f32 %v132, %v136
    %v139 = vsub.f32 0.0, %v137
    %v140 = vsub.f32 0.0, %v138
    %v141 = vmul.f32 %v139, %v105
    %v142 = vmul.f32 %v140, %v106
    %v143 = vld [vmem:[#allocation2] sm:$0x1]
    %vm144 = vcmask 7168
    %v145 = vsel %vm144, %v141, 0.0
    %v146 = vsel %vm144, %v142, 0.0
    %v147 = vadd.f32 %v145, %v146
    %v148 = vrot.slane %v147, 4
    %v149 = vadd.f32 %v147, %v148
    %v150 = vrot.slane %v149, 2
    %v151 = vadd.f32 %v149, %v150
    %v152 = vrot.slane %v151, 1
    %v153 = vadd.f32 %v151, %v152
    %v154 = vadd.f32 %v143, %v153
    %vm155 = vcmask 0
    %156 = vst.msk [vmem:[#allocation2] sm:$0x1] %vm155, %v154
    %v157 = vld [vmem:[%s82] sm:$0xff]
    %v158 = vld [vmem:[%s82 + $0x8] sm:$0xff]
    %vm159 = vcmp.eq.s32.totalorder %v103, 1
    %vm160 = vcmp.eq.s32.totalorder %v104, 1
    %v161 = vsel %vm159, %v157, 0.0
    %v162 = vsel %vm160, %v158, 0.0
    %vm163 = vcmask 64512
    %v164 = vsel %vm163, %v161, -inf
    %165 = vmax.xlane.f32.xlu0 %v164
    %v166 = vpop.xlane.xlu0 %165
    %v167 = vsel %vm163, %v162, -inf
    %168 = vmax.xlane.f32.xlu0 %v167
    %v169 = vpop.xlane.xlu0 %168
    %v170 = vsub.f32 %v161, %v166
    %v171 = vsub.f32 %v162, %v169
    %v172 = vmul.f32 %v170, 1.442695
    %v173 = vpow.pop %v172
    %v174 = vmul.f32 %v171, 1.442695
    %v175 = vpow.pop %v174
    %v176 = vsel %vm163, %v173, 0.0
    %177 = vadd.xlane.f32.xlu0 %v176
    %v178 = vpop.xlane.xlu0 %177
    %v179 = vsel %vm163, %v175, 0.0
    %180 = vadd.xlane.f32.xlu0 %v179
    %v181 = vpop.xlane.xlu0 %180
    %v182 = vlog2.pop %v178
    %v183 = vmul.f32 %v182, 0.6931472
    %v184 = vlog2.pop %v181
    %v185 = vmul.f32 %v184, 0.6931472
    %v186 = vadd.f32 %v166, %v183
    %v187 = vadd.f32 %v169, %v185
    %v188 = vlaneseq
    %v189 = vand.u32 %v188, 127
    %190 = vset.pattern.permute.xlu0 1
    %191 = vperm.xlu0 %190, %v109
    %v192 = vpop.permute.xlu0 %191
    %193 = vset.pattern.permute.xlu0 1
    %194 = vperm.xlu0 %193, %v110
    %v195 = vpop.permute.xlu0 %194
    %vm196 = vcmp.eq.s32.totalorder %v189, %v192
    %vm197 = vcmp.eq.s32.totalorder %v189, %v195
    %v198 = vsel %vm196, 1, 0
    %v199 = vsel %vm197, 1, 0
    %v200 = vcvt.s32.f32 %v198
    %v201 = vcvt.s32.f32 %v199
    %v202 = vmul.f32 %v161, %v200
    %v203 = vmul.f32 %v162, %v201
    %v204 = vsel %vm163, %v202, 0.0
    %205 = vadd.xlane.f32.xlu0 %v204
    %v206 = vpop.xlane.xlu0 %205
    %v207 = vsel %vm163, %v203, 0.0
    %208 = vadd.xlane.f32.xlu0 %v207
    %v209 = vpop.xlane.xlu0 %208
    %v210 = vsub.f32 %v186, %v206
    %v211 = vsub.f32 %v187, %v209
    %vm212 = vcmp.gt.f32.partialorder %v111, 0.0
    %vm213 = vcmp.gt.f32.partialorder %v112, 0.0
    %v214 = vsel %vm212, 1, 0
    %v215 = vsel %vm213, 1, 0
    %v216 = vcvt.s32.f32 %v214
    %v217 = vcvt.s32.f32 %v215
    %v218 = vld [vmem:[#allocation3] sm:$0x1]
    %v219 = vmul.f32 %v210, %v216
    %v220 = vmul.f32 %v211, %v217
    %v221 = vsel %vm144, %v219, 0.0
    %v222 = vsel %vm144, %v220, 0.0
    %v223 = vadd.f32 %v221, %v222
    %v224 = vrot.slane %v223, 4
    %v225 = vadd.f32 %v223, %v224
    %v226 = vrot.slane %v225, 2
    %v227 = vadd.f32 %v225, %v226
    %v228 = vrot.slane %v227, 1
    %v229 = vadd.f32 %v227, %v228
    %v230 = vadd.f32 %v218, %v229
    %231 = vst.msk [vmem:[#allocation3] sm:$0x1] %vm155, %v230
    %v232 = vld [vmem:[#allocation4] sm:$0x1]
    %v233 = vsel %vm144, %v216, 0.0
    %v234 = vsel %vm144, %v217, 0.0
    %v235 = vadd.f32 %v233, %v234
    %v236 = vrot.slane %v235, 4
    %v237 = vadd.f32 %v235, %v236
    %v238 = vrot.slane %v237, 2
    %v239 = vadd.f32 %v237, %v238
    %v240 = vrot.slane %v239, 1
    %v241 = vadd.f32 %v239, %v240
    %v242 = vadd.f32 %v232, %v241
    %243 = vst.msk [vmem:[#allocation4] sm:$0x1] %vm155, %v242
    // Predicated region
    $region18: #{tpu_custom_call.1} parent=1 // pred_check
      %p244 = pneg %p85
    $region19: #{tpu_custom_call.1} parent=1 // pred_check_branch
      %246 = sbr.rel (%p244) target = $region21
    $region20: #{tpu_custom_call.1} parent=1 // pred_region
      %v247 = vld [vmem:[#allocation2] sm:$0x1]
      %248 = vst.msk [vmem:[#allocation5] sm:$0x1] %vm155, %v247
      %v249 = vld [vmem:[#allocation3] sm:$0x1]
      %250 = vst.msk [vmem:[#allocation7] sm:$0x1] %vm155, %v249
      %v251 = vld [vmem:[#allocation4] sm:$0x1]
      %252 = vst.msk [vmem:[#allocation9] sm:$0x1] %vm155, %v251
    $region21: #{tpu_custom_call.1} parent=1 // pred_fallthru
      _
    // Predicated region
    $region22: #{tpu_custom_call.1} parent=1 // pred_check
      _
    $region23: #{tpu_custom_call.1} parent=1 // pred_check_branch
      %254 = sbr.rel (0) target = $region25
    $region24: #{tpu_custom_call.1} parent=1 // pred_region
      %s256 = ssub.s32 16, 16
      %257 = vsyncadd [#allocation6], %s256
      %s259 = sshll.u32 [#allocation5], 4
      %s260 = int_to_ptr.vmem [resolvable:$true] %s259
      %262 = dma.vmem_to_hbm [thread:$0]  %s260, 16, %s3, [#allocation6]
    $region25: #{tpu_custom_call.1} parent=1 // pred_fallthru
      _
    // Predicated region
    $region26: #{tpu_custom_call.1} parent=1 // pred_check
      _
    $region27: #{tpu_custom_call.1} parent=1 // pred_check_branch
      %264 = sbr.rel (0) target = $region29
    $region28: #{tpu_custom_call.1} parent=1 // pred_region
      %s266 = ssub.s32 16, 16
      %267 = vsyncadd [#allocation8], %s266
      %s269 = sshll.u32 [#allocation7], 4
      %s270 = int_to_ptr.vmem [resolvable:$true] %s269
      %272 = dma.vmem_to_hbm [thread:$0]  %s270, 16, %s4, [#allocation8]
    $region29: #{tpu_custom_call.1} parent=1 // pred_fallthru
      _
    // Predicated region
    $region30: #{tpu_custom_call.1} parent=1 // pred_check
      _
    $region31: #{tpu_custom_call.1} parent=1 // pred_check_branch
      %274 = sbr.rel (0) target = $region33
    $region32: #{tpu_custom_call.1} parent=1 // pred_region
      %s276 = ssub.s32 16, 16
      %277 = vsyncadd [#allocation8], %s276
      %s279 = sshll.u32 [#allocation9], 4
      %s280 = int_to_ptr.vmem [resolvable:$true] %s279
      %282 = dma.vmem_to_hbm [thread:$0]  %s280, 16, %s5, [#allocation8]
    $region33: #{tpu_custom_call.1} parent=1 // pred_fallthru
      _
    // Predicated region
    $region34: #{tpu_custom_call.1} parent=1 // pred_check
      _
    $region35: #{tpu_custom_call.1} parent=1 // pred_check_branch
      %284 = sbr.rel (0) target = $region37
    $region36: #{tpu_custom_call.1} parent=1 // pred_region
      %285 = dma.done [#allocation6], 16
    $region37: #{tpu_custom_call.1} parent=1 // pred_fallthru
      _
    // Predicated region
    $region38: #{tpu_custom_call.1} parent=1 // pred_check
      _
    $region39: #{tpu_custom_call.1} parent=1 // pred_check_branch
      %287 = sbr.rel (0) target = $region41
    $region40: #{tpu_custom_call.1} parent=1 // pred_region
      %288 = dma.done [#allocation8], 16
    $region41: #{tpu_custom_call.1} parent=1 // pred_fallthru
      _
    // Predicated region
    $region42: #{tpu_custom_call.1} parent=1 // pred_check
      _
    $region43: #{tpu_custom_call.1} parent=1 // pred_check_branch
      %290 = sbr.rel (0) target = $region45
    $region44: #{tpu_custom_call.1} parent=1 // pred_region
      %291 = dma.done [#allocation8], 16
    $region45: #{tpu_custom_call.1} parent=1 // pred_fallthru
      _
    %292 = vsyncpa [#allocation6], 1
    %293 = vsyncpa [#allocation8], 1

</llo_original>
